<compile_context>
chip_gen: v5e
topology: v5e:2x2
jax: 0.10.0
libtpu: 0.0.40
codegen_flags: <defaults>
</compile_context>

<pallas_src>
import jax
import jax.numpy as jnp
from jax.experimental import pallas as pl
from jax.experimental.pallas import tpu as pltpu


def radius_mlp_kernel(x_ref, w1_ref, b1_ref, w2_ref, b2_ref, o_ref):
    # x_ref: (1, TN)  w1_ref/b1_ref: (64, 1)  w2_ref: (1, 64)  b2_ref: (1, 1)
    x = x_ref[...]                                              # (1, TN)
    # Hidden layer as a rank-1 broadcast on the VPU (avoids a K=1 MXU matmul).
    h = jnp.maximum(w1_ref[...] * x + b1_ref[...], 0.0)        # (64, TN)
    # Output layer: (1,64) @ (64,TN) -> lane-dense (1, TN) on the MXU.
    y = jnp.dot(w2_ref[...], h, preferred_element_type=jnp.float32)
    o_ref[...] = (y + b2_ref[...]).astype(o_ref.dtype)


def radius_model_forward(x, w1, b1, w2, b2, *, tile_n=512):
    """x: (N, 1) float32. w1,b1: (64,1). w2: (1,64). b2: (1,1). Returns (N, 1) f32."""
    assert tile_n % 128 == 0, "tile_n must be a multiple of 128 (lane width)"
    N = x.shape[0]
    n_tiles = pl.cdiv(N, tile_n)
    n_pad = n_tiles * tile_n

    # Lane-dense layout: N sits on the lane axis, padded to a tile multiple.
    xt = jnp.pad(x[:, 0], (0, n_pad - N)).reshape(1, n_pad)

    out = pl.pallas_call(
        radius_mlp_kernel,
        out_shape=jax.ShapeDtypeStruct((1, n_pad), jnp.float32),
        grid=(n_tiles,),
        in_specs=[
            pl.BlockSpec((1, tile_n), lambda i: (0, i)),   # x tile, pipelined over N
            pl.BlockSpec(w1.shape, lambda i: (0, 0)),      # weights: constant index map
            pl.BlockSpec(b1.shape, lambda i: (0, 0)),      #  -> stay resident in VMEM
            pl.BlockSpec(w2.shape, lambda i: (0, 0)),
            pl.BlockSpec(b2.shape, lambda i: (0, 0)),
        ],
        out_specs=pl.BlockSpec((1, tile_n), lambda i: (0, i)),
        compiler_params=pltpu.CompilerParams(
            dimension_semantics=("parallel",)),            # shards across TCs on v7x
    )(xt, w1, b1, w2, b2)

    return out[0, :N].reshape(N, 1)


def init_params(key):
    """Deterministic init mimicking torch.nn.Linear (uniform(-1/sqrt(fan_in), ...)),
    in the kernel's layout: w1,b1 as (64,1); w2 as (1,64); b2 as (1,1)."""
    k1, k2, k3, k4 = jax.random.split(key, 4)
    bound1 = 1.0                      # 1/sqrt(1)
    w1 = jax.random.uniform(k1, (64, 1), jnp.float32, -bound1, bound1)
    b1 = jax.random.uniform(k2, (64, 1), jnp.float32, -bound1, bound1)
    bound2 = 1.0 / jnp.sqrt(64.0)
    w2 = jax.random.uniform(k3, (1, 64), jnp.float32, -bound2, bound2)
    b2 = jax.random.uniform(k4, (1, 1), jnp.float32, -bound2, bound2)
    return w1, b1, w2, b2


def reference_forward(x, w1, b1, w2, b2):
    # Same math in the standard (N, features) orientation.
    h = jnp.maximum(x @ w1.T + b1.T, 0.0)     # (N, 64)
    return h @ w2.T + b2                      # (N, 1)


if __name__ == "__main__":
    key = jax.random.PRNGKey(0)
    k_params, k_x = jax.random.split(key)
    w1, b1, w2, b2 = init_params(k_params)

    # Small but multi-tile (and non-multiple of the tile) to exercise the grid + padding.
    N = 300
    x = jax.random.normal(k_x, (N, 1), jnp.float32)

    out = radius_model_forward(x, w1, b1, w2, b2, tile_n=128)
    out = jax.block_until_ready(out)

    ref = reference_forward(x, w1, b1, w2, b2)
    assert out.shape == (N, 1)
    assert jnp.allclose(out, ref, atol=1e-5, rtol=1e-5), "mismatch vs reference"

    print("KERNEL_OK")
</pallas_src>

<mosaic_0001>
module attributes {stable_mosaic.version = 11 : i64} {
  func.func @radius_mlp_kernel(%arg0: i32, %arg1: memref<1x128xf32, #tpu.memory_space<vmem>>, %arg2: memref<64x1xf32, #tpu.memory_space<vmem>>, %arg3: memref<64x1xf32, #tpu.memory_space<vmem>>, %arg4: memref<1x64xf32, #tpu.memory_space<vmem>>, %arg5: memref<1x1xf32, #tpu.memory_space<vmem>>, %arg6: memref<1x128xf32, #tpu.memory_space<vmem>>) attributes {dimension_semantics = [#tpu.dimension_semantics<parallel>], iteration_bounds = array<i64: 3>, scalar_prefetch = 0 : i64, scratch_operands = 0 : i64, tpu.core_type = #tpu.core_type<tc>, window_params = [{transform_indices = @transform_0, window_bounds = array<i64: 1, 128>}, {pipeline_mode = #tpu.pipeline_mode<synchronous>, transform_indices = @transform_1, window_bounds = array<i64: 64, 1>}, {pipeline_mode = #tpu.pipeline_mode<synchronous>, transform_indices = @transform_2, window_bounds = array<i64: 64, 1>}, {pipeline_mode = #tpu.pipeline_mode<synchronous>, transform_indices = @transform_3, window_bounds = array<i64: 1, 64>}, {pipeline_mode = #tpu.pipeline_mode<synchronous>, transform_indices = @transform_4, window_bounds = array<i64: 1, 1>}, {transform_indices = @transform_5, window_bounds = array<i64: 1, 128>}]} {
    %c0 = arith.constant 0 : index
    %c0_0 = arith.constant 0 : index
    %0 = vector.load %arg1[%c0, %c0_0] : memref<1x128xf32, #tpu.memory_space<vmem>>, vector<1x128xf32>
    %c0_1 = arith.constant 0 : index
    %c0_2 = arith.constant 0 : index
    %1 = vector.load %arg2[%c0_1, %c0_2] : memref<64x1xf32, #tpu.memory_space<vmem>>, vector<64x1xf32>
    %2 = vector.broadcast %1 : vector<64x1xf32> to vector<64x128xf32>
    %3 = vector.broadcast %0 : vector<1x128xf32> to vector<64x128xf32>
    %4 = arith.mulf %2, %3 : vector<64x128xf32>
    %c0_3 = arith.constant 0 : index
    %c0_4 = arith.constant 0 : index
    %5 = vector.load %arg3[%c0_3, %c0_4] : memref<64x1xf32, #tpu.memory_space<vmem>>, vector<64x1xf32>
    %6 = vector.broadcast %5 : vector<64x1xf32> to vector<64x128xf32>
    %7 = arith.addf %4, %6 : vector<64x128xf32>
    %cst = arith.constant 0.000000e+00 : f32
    %8 = vector.broadcast %cst : f32 to vector<64x128xf32>
    %9 = arith.maximumf %7, %8 : vector<64x128xf32>
    %c0_5 = arith.constant 0 : index
    %c0_6 = arith.constant 0 : index
    %10 = vector.load %arg4[%c0_5, %c0_6] : memref<1x64xf32, #tpu.memory_space<vmem>>, vector<1x64xf32>
    %cst_7 = arith.constant dense<0.000000e+00> : vector<1x128xf32>
    %11 = tpu.matmul %10, %9, %cst_7 {dimension_numbers = #tpu.dot_dimension_numbers<[1], [0], [0], [1], [0, 0, 1, 1], [], []>} : vector<1x64xf32>, vector<64x128xf32>, vector<1x128xf32> -> vector<1x128xf32>
    %c0_8 = arith.constant 0 : index
    %c0_9 = arith.constant 0 : index
    %12 = vector.load %arg5[%c0_8, %c0_9] : memref<1x1xf32, #tpu.memory_space<vmem>>, vector<1x1xf32>
    %13 = vector.broadcast %12 : vector<1x1xf32> to vector<1x128xf32>
    %14 = arith.addf %11, %13 : vector<1x128xf32>
    %c0_10 = arith.constant 0 : index
    %c0_11 = arith.constant 0 : index
    %15 = vector.load %arg6[%c0_10, %c0_11] : memref<1x128xf32, #tpu.memory_space<vmem>>, vector<1x128xf32>
    tpu.vector_store %arg6[%c0_10, %c0_11], %14 {strides = array<i32>} : memref<1x128xf32, #tpu.memory_space<vmem>>, vector<1x128xf32>,
    return
  }
  func.func @transform_0(%arg0: i32) -> (i32, i32) {
    %c0_i32 = arith.constant 0 : i32
    %c0_i32_0 = arith.constant 0 : i32
    return %c0_i32, %arg0 : i32, i32
  }
  func.func @transform_1(%arg0: i32) -> (i32, i32) {
    %c0_i32 = arith.constant 0 : i32
    %c0_i32_0 = arith.constant 0 : i32
    %c0_i32_1 = arith.constant 0 : i32
    return %c0_i32, %c0_i32_0 : i32, i32
  }
  func.func @transform_2(%arg0: i32) -> (i32, i32) {
    %c0_i32 = arith.constant 0 : i32
    %c0_i32_0 = arith.constant 0 : i32
    %c0_i32_1 = arith.constant 0 : i32
    return %c0_i32, %c0_i32_0 : i32, i32
  }
  func.func @transform_3(%arg0: i32) -> (i32, i32) {
    %c0_i32 = arith.constant 0 : i32
    %c0_i32_0 = arith.constant 0 : i32
    %c0_i32_1 = arith.constant 0 : i32
    return %c0_i32, %c0_i32_0 : i32, i32
  }
  func.func @transform_4(%arg0: i32) -> (i32, i32) {
    %c0_i32 = arith.constant 0 : i32
    %c0_i32_0 = arith.constant 0 : i32
    %c0_i32_1 = arith.constant 0 : i32
    return %c0_i32, %c0_i32_0 : i32, i32
  }
  func.func @transform_5(%arg0: i32) -> (i32, i32) {
    %c0_i32 = arith.constant 0 : i32
    %c0_i32_0 = arith.constant 0 : i32
    return %c0_i32, %arg0 : i32, i32
  }
}

</mosaic_0001>

<llo_original>
// kernel: tpu_custom_call.1
$region0: #{tpu_custom_call.1}
  #allocation0 [shape = 'u32[]', space=smem, size = 0x4, offset = 0x4, fixed_abs, tag = 'smem constant byte address 0x4 - core index']
  #allocation1 [shape = 'u32[72,128]{1,0:T(1,128)}', space=vmem, size = 0x9000, scoped, tag = 'internal scratch']
  #allocation2 [shape = 'f32[1,1]{1,0:T(1,128)S(1)}', space=vmem, size = 0x200, scoped, tag = 'scoped memory for tpu_custom_call.1']
  %s0 = inlined_call_operand.vmem [shape: f32[1,384], index: 0, kind: input, shape index: {}]
  %s1 = inlined_call_operand.vmem [shape: f32[64,1], index: 1, kind: input, shape index: {}]
  %s2 = inlined_call_operand.vmem [shape: f32[64,1], index: 2, kind: input, shape index: {}]
  %s3 = inlined_call_operand.vmem [shape: f32[1,64], index: 3, kind: input, shape index: {}]
  %s4 = inlined_call_operand.<no memory space> [shape: f32[1,1], index: 4, kind: input, shape index: {}]
  %s5 = inlined_call_operand.hbm [shape: f32[1,384], index: 5, kind: output, shape index: {}]
  %s6 = sld [smem:[#allocation0]]
  $region53: #{tpu_custom_call.1} parent=0
    _
  %s8 = ssub.s32 1, %s6
  %s9 = scalar_select 0, %s8, %s6
  %v10 = vstv %s4
  %11 = vst [vmem:[#allocation2] sm:$0x1] %v10
  $region1: #{tpu_custom_call.1} parent=0
    #allocation3 [shape = 'u8[1024]{0}', space=vmem, size = 0x400, scoped, tag = 'output window, operand 0']
    #allocation4 [shape = 's32[2]{0}', space=sflag, size = 0x8, scoped, tag = 'scoped memory for tpu_custom_call.1']
    %12 = vsyncpa [#allocation4], 0
    %s13 = scalar_lea.sflag [#allocation4], 1
    %14 = vsyncpa %s13, 0
    loop: start=0, step=1, limit=5
    $region2: #{tpu_custom_call.1} parent=1 // loop_pre_header
      _
    $region3: #{tpu_custom_call.1} parent=1 // loop_header
      %s16 = sphi 0, %s20
      %p17 = scmp.ge.s32.totalorder %s16, 5
      %s26 = sphi 0, %s28
      %s29 = sphi 0, %s26
      %s30 = sphi 0, %s29
      %s46 = sphi 0, %s30
      %s50 = sphi 0, %s50
      %s52 = sphi 0, %s50
      %s53 = sphi 0, %s52
      %s67 = sphi 0, %s53
      %s71 = sphi 0, %s71
      %s73 = sphi 0, %s71
      %s74 = sphi 0, %s73
      %s88 = sphi 0, %s74
      %s92 = sphi 0, %s92
      %s94 = sphi 0, %s92
      %s95 = sphi 0, %s94
      %s109 = sphi 0, %s95
      %s113 = sphi 0, %s113
      %s115 = sphi 0, %s113
      %s116 = sphi 0, %s115
      %s130 = sphi 0, %s116
      %s136 = sphi 0, %s138
      %s139 = sphi 0, %s136
      %s140 = sphi 0, %s139
      %s156 = sphi 0, %s140
    $region4: #{tpu_custom_call.1} parent=1 // loop_header_branch
      %19 = sbr.rel (%p17) target = $region8
    $region5: #{tpu_custom_call.1} parent=1 // loop_body
      %s21 = ssub.s32 %s16, 1
      %s22 = ssub.s32 %s16, 2
      %s23 = sadd.s32 %s16, 1
      %s24 = ssub.s32 %s16, %s23
      %p25 = scmp.eq.s32.totalorder %s24, 0
      %s27 = sadd.s32 %s26, 1
      %s28 = scalar_select %p25, %s26, %s27
      %p31 = pneg %p25
      %p32 = scmp.eq.s32.totalorder %s16, 2
      %p33 = por %p31, %p32
      %p34 = scmp.ne.s32.totalorder %s26, %s29
      %p35 = scmp.eq.s32.totalorder %s16, 0
      %p36 = por %p34, %p35
      %p37 = scmp.ne.s32.totalorder %s26, %s29
      %p38 = scmp.eq.s32.totalorder %s21, 2
      %p39 = por %p37, %p38
      %p40 = scmp.ne.s32.totalorder %s29, %s30
      %p41 = scmp.eq.s32.totalorder %s21, 0
      %p42 = por %p40, %p41
      %p43 = scmp.ne.s32.totalorder %s29, %s30
      %p44 = scmp.eq.s32.totalorder %s22, 2
      %p45 = por %p43, %p44
      %p47 = scmp.ne.s32.totalorder %s30, %s46
      %p48 = scmp.eq.s32.totalorder %s22, 0
      %p49 = por %p47, %p48
      %s51 = sadd.s32 %s50, 1
      %p54 = scmp.eq.s32.totalorder %s16, 2
      %p55 = scmp.ne.s32.totalorder %s50, %s52
      %p56 = scmp.eq.s32.totalorder %s16, 0
      %p57 = por %p55, %p56
      %p58 = scmp.ne.s32.totalorder %s50, %s52
      %p59 = scmp.eq.s32.totalorder %s21, 2
      %p60 = por %p58, %p59
      %p61 = scmp.ne.s32.totalorder %s52, %s53
      %p62 = scmp.eq.s32.totalorder %s21, 0
      %p63 = por %p61, %p62
      %p64 = scmp.ne.s32.totalorder %s52, %s53
      %p65 = scmp.eq.s32.totalorder %s22, 2
      %p66 = por %p64, %p65
      %p68 = scmp.ne.s32.totalorder %s53, %s67
      %p69 = scmp.eq.s32.totalorder %s22, 0
      %p70 = por %p68, %p69
      %s72 = sadd.s32 %s71, 1
      %p75 = scmp.eq.s32.totalorder %s16, 2
      %p76 = scmp.ne.s32.totalorder %s71, %s73
      %p77 = scmp.eq.s32.totalorder %s16, 0
      %p78 = por %p76, %p77
      %p79 = scmp.ne.s32.totalorder %s71, %s73
      %p80 = scmp.eq.s32.totalorder %s21, 2
      %p81 = por %p79, %p80
      %p82 = scmp.ne.s32.totalorder %s73, %s74
      %p83 = scmp.eq.s32.totalorder %s21, 0
      %p84 = por %p82, %p83
      %p85 = scmp.ne.s32.totalorder %s73, %s74
      %p86 = scmp.eq.s32.totalorder %s22, 2
      %p87 = por %p85, %p86
      %p89 = scmp.ne.s32.totalorder %s74, %s88
      %p90 = scmp.eq.s32.totalorder %s22, 0
      %p91 = por %p89, %p90
      %s93 = sadd.s32 %s92, 1
      %p96 = scmp.eq.s32.totalorder %s16, 2
      %p97 = scmp.ne.s32.totalorder %s92, %s94
      %p98 = scmp.eq.s32.totalorder %s16, 0
      %p99 = por %p97, %p98
      %p100 = scmp.ne.s32.totalorder %s92, %s94
      %p101 = scmp.eq.s32.totalorder %s21, 2
      %p102 = por %p100, %p101
      %p103 = scmp.ne.s32.totalorder %s94, %s95
      %p104 = scmp.eq.s32.totalorder %s21, 0
      %p105 = por %p103, %p104
      %p106 = scmp.ne.s32.totalorder %s94, %s95
      %p107 = scmp.eq.s32.totalorder %s22, 2
      %p108 = por %p106, %p107
      %p110 = scmp.ne.s32.totalorder %s95, %s109
      %p111 = scmp.eq.s32.totalorder %s22, 0
      %p112 = por %p110, %p111
      %s114 = sadd.s32 %s113, 1
      %p117 = scmp.eq.s32.totalorder %s16, 2
      %p118 = scmp.ne.s32.totalorder %s113, %s115
      %p119 = scmp.eq.s32.totalorder %s16, 0
      %p120 = por %p118, %p119
      %p121 = scmp.ne.s32.totalorder %s113, %s115
      %p122 = scmp.eq.s32.totalorder %s21, 2
      %p123 = por %p121, %p122
      %p124 = scmp.ne.s32.totalorder %s115, %s116
      %p125 = scmp.eq.s32.totalorder %s21, 0
      %p126 = por %p124, %p125
      %p127 = scmp.ne.s32.totalorder %s115, %s116
      %p128 = scmp.eq.s32.totalorder %s22, 2
      %p129 = por %p127, %p128
      %p131 = scmp.ne.s32.totalorder %s116, %s130
      %p132 = scmp.eq.s32.totalorder %s22, 0
      %p133 = por %p131, %p132
      %s134 = ssub.s32 %s16, %s23
      %p135 = scmp.eq.s32.totalorder %s134, 0
      %s137 = sadd.s32 %s136, 1
      %s138 = scalar_select %p135, %s136, %s137
      %p141 = pneg %p135
      %p142 = scmp.eq.s32.totalorder %s16, 2
      %p143 = por %p141, %p142
      %p144 = scmp.ne.s32.totalorder %s136, %s139
      %p145 = scmp.eq.s32.totalorder %s16, 0
      %p146 = por %p144, %p145
      %p147 = scmp.ne.s32.totalorder %s136, %s139
      %p148 = scmp.eq.s32.totalorder %s21, 2
      %p149 = por %p147, %p148
      %p150 = scmp.ne.s32.totalorder %s139, %s140
      %p151 = scmp.eq.s32.totalorder %s21, 0
      %p152 = por %p150, %p151
      %p153 = scmp.ne.s32.totalorder %s139, %s140
      %p154 = scmp.eq.s32.totalorder %s22, 2
      %p155 = por %p153, %p154
      %p157 = scmp.ne.s32.totalorder %s140, %s156
      %p158 = scmp.eq.s32.totalorder %s22, 0
      %p159 = por %p157, %p158
      %p160 = scmp.le.s32.totalorder 1, %s16
      %p161 = scmp.lt.s32.totalorder %s16, 4
      %p162 = pnand %p160, %p161
      %p163 = pneg %p162
      // Predicated region
      $region9: #{tpu_custom_call.1} parent=5 // pred_check
        _
      $region10: #{tpu_custom_call.1} parent=5 // pred_check_branch
        %165 = sbr.rel (%p162) target = $region12
      $region11: #{tpu_custom_call.1} parent=5 // pred_region
        %s166 = ssub.s32 %s16, 1
        // Predicated region
        $region13: #{tpu_custom_call.1} parent=11 // pred_check
          %p167 = pneg %p63
        $region14: #{tpu_custom_call.1} parent=11 // pred_check_branch
          %169 = sbr.rel (%p167) target = $region16
        $region15: #{tpu_custom_call.1} parent=11 // pred_region
          _
        $region16: #{tpu_custom_call.1} parent=11 // pred_fallthru
          _
        // Predicated region
        $region17: #{tpu_custom_call.1} parent=11 // pred_check
          %p170 = pneg %p84
        $region18: #{tpu_custom_call.1} parent=11 // pred_check_branch
          %172 = sbr.rel (%p170) target = $region20
        $region19: #{tpu_custom_call.1} parent=11 // pred_region
          _
        $region20: #{tpu_custom_call.1} parent=11 // pred_fallthru
          _
        // Predicated region
        $region21: #{tpu_custom_call.1} parent=11 // pred_check
          %p173 = pneg %p105
        $region22: #{tpu_custom_call.1} parent=11 // pred_check_branch
          %175 = sbr.rel (%p173) target = $region24
        $region23: #{tpu_custom_call.1} parent=11 // pred_region
          _
        $region24: #{tpu_custom_call.1} parent=11 // pred_fallthru
          _
        // Predicated region
        $region25: #{tpu_custom_call.1} parent=11 // pred_check
          %p176 = pneg %p126
        $region26: #{tpu_custom_call.1} parent=11 // pred_check_branch
          %178 = sbr.rel (%p176) target = $region28
        $region27: #{tpu_custom_call.1} parent=11 // pred_region
          _
        $region28: #{tpu_custom_call.1} parent=11 // pred_fallthru
          _
      $region12: #{tpu_custom_call.1} parent=5 // pred_fallthru
        _
      %p179 = scmp.lt.s32.totalorder %s16, 3
      // Predicated region
      $region29: #{tpu_custom_call.1} parent=5 // pred_check
        %p180 = pneg %p179
      $region30: #{tpu_custom_call.1} parent=5 // pred_check_branch
        %182 = sbr.rel (%p180) target = $region32
      $region31: #{tpu_custom_call.1} parent=5 // pred_region
        // Predicated region
        $region33: #{tpu_custom_call.1} parent=31 // pred_check
          %p183 = pneg %p36
        $region34: #{tpu_custom_call.1} parent=31 // pred_check_branch
          %185 = sbr.rel (%p183) target = $region36
        $region35: #{tpu_custom_call.1} parent=31 // pred_region
          %p186 = scmp.lt.s32.totalorder %s16, 2
          %s187 = scalar_select %p186, %s16, 2
          %s188 = scalar_lea.vmem %s0, %s187
        $region36: #{tpu_custom_call.1} parent=31 // pred_fallthru
          _
      $region32: #{tpu_custom_call.1} parent=5 // pred_fallthru
        _
      %p189 = scmp.le.s32.totalorder 1, %s16
      %p190 = scmp.lt.s32.totalorder %s16, 4
      %p191 = pnand %p189, %p190
      %p192 = pneg %p191
      // Predicated region
      $region37: #{tpu_custom_call.1} parent=5 // pred_check
        _
      $region38: #{tpu_custom_call.1} parent=5 // pred_check_branch
        %194 = sbr.rel (%p191) target = $region40
      $region39: #{tpu_custom_call.1} parent=5 // pred_region
        %s195 = ssub.s32 %s16, 1
        %p196 = scmp.lt.s32.totalorder %s21, 2
        %s197 = scalar_select %p196, %s21, 2
        %s198 = scalar_lea.vmem %s0, %s197
        %p199 = pneg %p42
        %p200 = pneg %p39
        %p201 = pneg %p63
        %p202 = pneg %p60
        %p203 = pneg %p84
        %p204 = pneg %p81
        %p205 = pneg %p105
        %p206 = pneg %p102
        %p207 = pneg %p126
        %p208 = pneg %p123
        %p209 = pneg %p152
        %p210 = pneg %p149
        %s211 = sand.u32 %s139, 1
        %s212 = scalar_lea.sflag [#allocation4], %s211
        %s213 = sand.u32 %s139, 1
        %s214 = scalar_lea.vmem [#allocation3], %s213
        %p215 = scmp.lt.s32.totalorder %s21, 2
        %s216 = scalar_select %p215, %s21, 2
        %s217 = scalar_lea.vmem %s0, %s216
        %v218 = vld [vmem:[%s217] sm:$0x1]
        %v219 = vld [vmem:[%s1] sm:$0xff]
        %v220 = vld [vmem:[%s1 + $0x8] sm:$0xff]
        %v221 = vld [vmem:[%s1 + $0x10] sm:$0xff]
        %v222 = vld [vmem:[%s1 + $0x18] sm:$0xff]
        %v223 = vld [vmem:[%s1 + $0x20] sm:$0xff]
        %v224 = vld [vmem:[%s1 + $0x28] sm:$0xff]
        %v225 = vld [vmem:[%s1 + $0x30] sm:$0xff]
        %v226 = vld [vmem:[%s1 + $0x38] sm:$0xff]
        %228 = vset.pattern.permute.xlu0 0
        %229 = vperm.xlu0 %228, %v219
        %v230 = vpop.permute.xlu0 %229
        %233 = vset.pattern.permute.xlu0 0
        %234 = vperm.xlu0 %233, %v220
        %v235 = vpop.permute.xlu0 %234
        %238 = vset.pattern.permute.xlu0 0
        %239 = vperm.xlu0 %238, %v221
        %v240 = vpop.permute.xlu0 %239
        %243 = vset.pattern.permute.xlu0 0
        %244 = vperm.xlu0 %243, %v222
        %v245 = vpop.permute.xlu0 %244
        %248 = vset.pattern.permute.xlu0 0
        %249 = vperm.xlu0 %248, %v223
        %v250 = vpop.permute.xlu0 %249
        %253 = vset.pattern.permute.xlu0 0
        %254 = vperm.xlu0 %253, %v224
        %v255 = vpop.permute.xlu0 %254
        %258 = vset.pattern.permute.xlu0 0
        %259 = vperm.xlu0 %258, %v225
        %v260 = vpop.permute.xlu0 %259
        %263 = vset.pattern.permute.xlu0 0
        %264 = vperm.xlu0 %263, %v226
        %v265 = vpop.permute.xlu0 %264
        %v268 = vperm.slane %v218, 0
        %v270 = vmul.f32 %v230, %v268
        %v271 = vmul.f32 %v235, %v268
        %v272 = vmul.f32 %v240, %v268
        %v273 = vmul.f32 %v245, %v268
        %v274 = vmul.f32 %v250, %v268
        %v275 = vmul.f32 %v255, %v268
        %v276 = vmul.f32 %v260, %v268
        %v277 = vmul.f32 %v265, %v268
        %v278 = vld [vmem:[%s2] sm:$0xff]
        %v279 = vld [vmem:[%s2 + $0x8] sm:$0xff]
        %v280 = vld [vmem:[%s2 + $0x10] sm:$0xff]
        %v281 = vld [vmem:[%s2 + $0x18] sm:$0xff]
        %v282 = vld [vmem:[%s2 + $0x20] sm:$0xff]
        %v283 = vld [vmem:[%s2 + $0x28] sm:$0xff]
        %v284 = vld [vmem:[%s2 + $0x30] sm:$0xff]
        %v285 = vld [vmem:[%s2 + $0x38] sm:$0xff]
        %287 = vset.pattern.permute.xlu0 0
        %288 = vperm.xlu0 %287, %v278
        %v289 = vpop.permute.xlu0 %288
        %292 = vset.pattern.permute.xlu0 0
        %293 = vperm.xlu0 %292, %v279
        %v294 = vpop.permute.xlu0 %293
        %297 = vset.pattern.permute.xlu0 0
        %298 = vperm.xlu0 %297, %v280
        %v299 = vpop.permute.xlu0 %298
        %302 = vset.pattern.permute.xlu0 0
        %303 = vperm.xlu0 %302, %v281
        %v304 = vpop.permute.xlu0 %303
        %307 = vset.pattern.permute.xlu0 0
        %308 = vperm.xlu0 %307, %v282
        %v309 = vpop.permute.xlu0 %308
        %312 = vset.pattern.permute.xlu0 0
        %313 = vperm.xlu0 %312, %v283
        %v314 = vpop.permute.xlu0 %313
        %317 = vset.pattern.permute.xlu0 0
        %318 = vperm.xlu0 %317, %v284
        %v319 = vpop.permute.xlu0 %318
        %322 = vset.pattern.permute.xlu0 0
        %323 = vperm.xlu0 %322, %v285
        %v324 = vpop.permute.xlu0 %323
        %v326 = vadd.f32 %v270, %v289
        %v327 = vadd.f32 %v271, %v294
        %v328 = vadd.f32 %v272, %v299
        %v329 = vadd.f32 %v273, %v304
        %v330 = vadd.f32 %v274, %v309
        %v331 = vadd.f32 %v275, %v314
        %v332 = vadd.f32 %v276, %v319
        %v333 = vadd.f32 %v277, %v324
        %v334 = vmax.f32 %v326, 0.0
        %v335 = vmax.f32 %v327, 0.0
        %v336 = vmax.f32 %v328, 0.0
        %v337 = vmax.f32 %v329, 0.0
        %v338 = vmax.f32 %v330, 0.0
        %v339 = vmax.f32 %v331, 0.0
        %v340 = vmax.f32 %v332, 0.0
        %v341 = vmax.f32 %v333, 0.0
        %v342 = vld [vmem:[%s3] sm:$0x1]
        %v343 = vld [vmem:[#allocation2] sm:$0x1]
        %345 = vset.pattern.permute.xlu0 0
        %346 = vperm.xlu0 %345, %v343
        %v347 = vpop.permute.xlu0 %346
        %v349 = vperm.slane %v347, 0
        %vm350 = vcmask 523264
        %v352 = vsel %vm350, %v342, 0
        %354 = vmatpush.msra.mxu0 0.0
        %355 = vmatpush.msra.mxu0 0.0
        %356 = vmatpush.msra.mxu0 0.0
        %357 = vmatpush.msra.mxu0 0.0
        %358 = vmatpush.msra.mxu0 0.0
        %359 = vmatpush.msra.mxu0 0.0
        %360 = vmatpush.msra.mxu0 0.0
        %361 = vmatpush.msra.mxu0 0.0
        %362 = vmatpush.msra.mxu0 %v341
        %363 = vmatpush.msra.mxu0 %v340
        %364 = vmatpush.msra.mxu0 %v339
        %365 = vmatpush.msra.mxu0 %v338
        %366 = vmatpush.msra.mxu0 %v337
        %367 = vmatpush.msra.mxu0 %v336
        %368 = vmatpush.msra.mxu0 %v335
        %369 = vmatpush.msra.mxu0 %v334
        %370 = vmatmul.f32.gmra.mxu0 %v352
        %v371 = vpop.f32.mrf.mxu0
        %v372 = vadd.f32 %v349, %v371
        %373 = vdwg.mxu0
        %374 = vst [vmem:[%s214] sm:$0x1] %v372
        %s375 = sand.u32 %s139, 1
        %s376 = scalar_lea.sflag [#allocation4], %s375
        %s377 = sand.u32 %s139, 1
        %s378 = scalar_lea.vmem [#allocation3], %s377
        // Predicated region
        $region41: #{tpu_custom_call.1} parent=39 // pred_check
          %p379 = pneg %p149
        $region42: #{tpu_custom_call.1} parent=39 // pred_check_branch
          %381 = sbr.rel (%p379) target = $region44
        $region43: #{tpu_custom_call.1} parent=39 // pred_region
          %383 = vsyncadd %s376, 0
          %s384 = scalar_lea.hbm %s5, %s21
          %s386 = sshll.u32 %s378, 4
          %s387 = int_to_ptr.vmem [resolvable:$true] %s386
          %s388 = sshll.u32 %s384, 4
          %s389 = int_to_ptr.hbm [resolvable:$true] %s388
          %391 = dma.vmem_to_hbm [thread:$0]  %s387, 16, %s389, %s376
        $region44: #{tpu_custom_call.1} parent=39 // pred_fallthru
          _
      $region40: #{tpu_custom_call.1} parent=5 // pred_fallthru
        _
      %p392 = scmp.le.s32.totalorder 2, %s16
      // Predicated region
      $region45: #{tpu_custom_call.1} parent=5 // pred_check
        %p393 = pneg %p392
      $region46: #{tpu_custom_call.1} parent=5 // pred_check_branch
        %395 = sbr.rel (%p393) target = $region48
      $region47: #{tpu_custom_call.1} parent=5 // pred_region
        %s396 = ssub.s32 %s16, 2
        // Predicated region
        $region49: #{tpu_custom_call.1} parent=47 // pred_check
          %p397 = pneg %p155
        $region50: #{tpu_custom_call.1} parent=47 // pred_check_branch
          %399 = sbr.rel (%p397) target = $region52
        $region51: #{tpu_custom_call.1} parent=47 // pred_region
          %s400 = sand.u32 %s140, 1
          %s401 = scalar_lea.sflag [#allocation4], %s400
          %s402 = sand.u32 %s140, 1
          %s403 = scalar_lea.vmem [#allocation3], %s402
          %405 = dma.done %s401, 16
        $region52: #{tpu_custom_call.1} parent=47 // pred_fallthru
          _
      $region48: #{tpu_custom_call.1} parent=5 // pred_fallthru
        _
    $region6: #{tpu_custom_call.1} parent=1 // loop_footer
      %s20 = sadd.s32 1, %s16
    $region7: #{tpu_custom_call.1} parent=1 // loop_footer_branch
      %15 = sbr.rel target = $region3
    $region8: #{tpu_custom_call.1} parent=1 // loop_exit
      _
    %406 = vsyncpa [#allocation4], 1
    %s407 = scalar_lea.sflag [#allocation4], 1
    %408 = vsyncpa %s407, 1

</llo_original>
